<compile_context>
chip_gen: v7x
topology: tpu7x:2x2x1
jax: 0.10.0
libtpu: 0.0.40
codegen_flags: <defaults>
</compile_context>

<pallas_src>
import jax
import jax.numpy as jnp
from jax.experimental import pallas as pl
from jax.experimental.pallas import tpu as pltpu


_MAX_TILE_ORIG_ROWS = 2048   # row-tile cap in original (unpacked) rows


def _round_up(x, m):
    return ((x + m - 1) // m) * m


def _aggregate_kernel(x_ref, w3_ref, b3_ref, w4_ref, b4_ref, out_ref):
    # fc3 on the MXU: cast the f32 activation tile to bf16 here (VPU has huge slack;
    # this removes a whole host-side HBM pass over x).  f32 accumulation.
    x = x_ref[...].astype(jnp.bfloat16)
    h = jnp.dot(x, w3_ref[...], preferred_element_type=jnp.float32)
    # Bias + ReLU in f32 on the VPU.
    h = jnp.maximum(h + b3_ref[...], 0.0)
    # fc4 on the MXU: re-pack activations to bf16, accumulate in f32.
    y = jnp.dot(h.astype(jnp.bfloat16), w4_ref[...],
                preferred_element_type=jnp.float32)
    y = y + b4_ref[...]
    # Exact sigmoid: exp on the EUP, one f32 divide on the VPU (both have slack in
    # this HBM-bound kernel), no approx-reciprocal error.
    out_ref[...] = (1.0 / (1.0 + jnp.exp(-y))).astype(out_ref.dtype)


def _vmem_budget_bytes():
    """Generation-aware VMEM budget: half the reported per-core capacity
    (64 MiB/TC on v7x, 128 MiB on v5e/v6e) so Mosaic scratch/double-buffers fit."""
    try:
        cap = getattr(pltpu.get_tpu_info(), "vmem_capacity_bytes", None)
    except Exception:
        cap = None
    if not cap:
        cap = 64 * 1024 * 1024   # conservative default (v7x per-TC VMEM)
    return int(cap) // 2


def _pick_pack(m_rows, d_in, h, d_out):
    """Fold 8 consecutive rows into the lane axis (block-diagonal kron(I_8, W)
    weights) when that keeps the resident weights small.  Makes both HBM streams
    128-lane dense with zero padding bytes; math is exact."""
    if m_rows % 8 != 0:
        return 1
    packed_weight_bytes = 64 * (d_in * h + h * d_out) * 2   # bf16 kron weights
    if packed_weight_bytes > 8 * 1024 * 1024:
        return 1
    return 8


def _row_cap(d_in_k, h_k, d_out_k, pack, vmem_budget):
    """Max kernel rows per tile under the VMEM budget (and the 2048 orig-row cap)."""
    # Resident weights/biases (count double-buffered to be safe).
    weight_bytes = 2 * ((d_in_k * h_k + h_k * d_out_k) * 2 + (h_k + d_out_k) * 4)
    # Per kernel-row VMEM: double-buffered f32 x/out tiles + in-kernel f32/bf16
    # intermediates (h, bf16 copies, y).
    per_row = (4 * (2 * d_in_k + 2 * d_out_k) + 4 * h_k
               + 2 * (d_in_k + h_k) + 4 * d_out_k)
    cap = (vmem_budget - weight_bytes) // max(per_row, 1)
    cap = min(cap, max(_MAX_TILE_ORIG_ROWS // pack, 8))
    return max(8, (cap // 8) * 8)


def _choose_tile(m_k, row_cap):
    """Pick (rows_per_block, grid) on the row axis (kernel rows).  Tiles are always a
    multiple of 8 sublanes; Pallas masks the partial last block."""
    row_cap = max(8, row_cap)
    if m_k <= row_cap:
        if m_k >= 16 and m_k % 16 == 0:
            return m_k // 2, 2           # give v7x's second TensorCore some work
        return _round_up(m_k, 8), 1
    grid = max(2, pl.cdiv(m_k, row_cap))
    if grid % 2:
        grid += 1                        # balanced split across v7x's two TCs
    tm = _round_up(pl.cdiv(m_k, grid), 8)
    # Best-effort nudge so the realized grid is even (rounding can re-skew it).
    for cand in range(tm, max(tm - 64, 8) - 1, -8):
        if pl.cdiv(m_k, cand) % 2 == 0:
            tm = cand
            break
    return tm, pl.cdiv(m_k, tm)


def aggregate_forward(x, w3, b3, w4, b4):
    """x: (B, N, D_in) f32.  w3: (D_in, H), w4: (H, D_out) stored as (in, out);
    b3: (H,), b4: (D_out,).  Returns (em_s, em_v) like the PyTorch forward."""
    B, N, D_in = x.shape
    H = w3.shape[1]
    D_out = w4.shape[1]
    M = B * N

    pack = _pick_pack(M, D_in, H, D_out)
    m_k = M // pack
    d_in_k, h_k, d_out_k = pack * D_in, pack * H, pack * D_out

    vmem_budget = _vmem_budget_bytes()
    tm, grid = _choose_tile(m_k, _row_cap(d_in_k, h_k, d_out_k, pack, vmem_budget))

    # Free row-major view of x -- no host pad/cast pass over the activation stream.
    x_k = x.reshape(m_k, d_in_k)

    # Parameters (tiny, one-time; in a real model these would be pre-packed once):
    # bf16 matmul operands, f32 biases.  pack>1 builds block-diagonal kron weights.
    if pack == 1:
        w3_k = w3.astype(jnp.bfloat16)
        w4_k = w4.astype(jnp.bfloat16)
        b3_k = b3.astype(jnp.float32).reshape(1, h_k)
        b4_k = b4.astype(jnp.float32).reshape(1, d_out_k)
    else:
        eye = jnp.eye(pack, dtype=jnp.float32)
        w3_k = jnp.kron(eye, w3.astype(jnp.float32)).astype(jnp.bfloat16)
        w4_k = jnp.kron(eye, w4.astype(jnp.float32)).astype(jnp.bfloat16)
        b3_k = jnp.tile(b3.astype(jnp.float32), pack).reshape(1, h_k)
        b4_k = jnp.tile(b4.astype(jnp.float32), pack).reshape(1, d_out_k)

    y = pl.pallas_call(
        _aggregate_kernel,
        out_shape=jax.ShapeDtypeStruct((m_k, d_out_k), jnp.float32),
        grid_spec=pltpu.PrefetchScalarGridSpec(
            num_scalar_prefetch=0,
            grid=(grid,),
            in_specs=[
                pl.BlockSpec((tm, d_in_k), lambda i: (i, 0)),     # x row tile (f32)
                pl.BlockSpec((d_in_k, h_k), lambda i: (0, 0)),    # w3 (resident)
                pl.BlockSpec((1, h_k), lambda i: (0, 0)),         # b3
                pl.BlockSpec((h_k, d_out_k), lambda i: (0, 0)),   # w4 (resident)
                pl.BlockSpec((1, d_out_k), lambda i: (0, 0)),     # b4
            ],
            out_specs=pl.BlockSpec((tm, d_out_k), lambda i: (i, 0)),
        ),
        compiler_params=pltpu.CompilerParams(
            dimension_semantics=("parallel",),
            vmem_limit_bytes=vmem_budget,
        ),
    )(x_k, w3_k, b3_k, w4_k, b4_k)

    # Free un-fold of the lane-packed rows (row-major reshape, no data movement).
    relation_score = y.reshape(B, N, D_out)

    # Slicing glue identical to the PyTorch forward.
    half = int(relation_score.shape[2] / 2)
    em_s = relation_score[:, :, 0:half]
    em_v = relation_score[:, :, half:1024]   # clamps to D_out, same as torch
    return em_s, em_v


if __name__ == "__main__":
    # Small, forward-consistent shapes.
    B, N = 2, 8
    input_size, hidden_size, output_size = 32, 32, 16

    key = jax.random.PRNGKey(0)
    k_x, k_w3, k_b3, k_w4, k_b4 = jax.random.split(key, 5)

    x = jax.random.normal(k_x, (B, N, input_size), dtype=jnp.float32)

    # Deterministic synthetic parameters (fc3: input->hidden, fc4: hidden->output),
    # stored already-transposed as (in, out) so the kernel computes x @ W + b.
    w3 = jax.random.normal(k_w3, (input_size, hidden_size), dtype=jnp.float32) * 0.1
    b3 = jax.random.normal(k_b3, (hidden_size,), dtype=jnp.float32) * 0.1
    w4 = jax.random.normal(k_w4, (hidden_size, output_size), dtype=jnp.float32) * 0.1
    b4 = jax.random.normal(k_b4, (output_size,), dtype=jnp.float32) * 0.1

    # TODO(synk): self.bn3, self.softmax, self.pool are defined in __init__ but
    # unused in forward(), so they are intentionally not implemented.

    fwd = jax.jit(aggregate_forward)
    em_s, em_v = fwd(x, w3, b3, w4, b4)
    jax.block_until_ready((em_s, em_v))

    # Lightweight correctness check against a pure-JAX f32 reference.
    # (Kernel uses bf16 matmul operands with f32 accumulation.)
    ref = jax.nn.sigmoid(jnp.maximum(x @ w3 + b3, 0.0) @ w4 + b4)
    half = output_size // 2
    assert em_s.shape == (B, N, half) and em_v.shape == (B, N, output_size - half)
    assert jnp.allclose(em_s, ref[:, :, :half], atol=1e-2)
    assert jnp.allclose(em_v, ref[:, :, half:1024], atol=1e-2)

    print("KERNEL_OK")
</pallas_src>

<mosaic_0001>
module attributes {stable_mosaic.version = 11 : i64} {
  func.func @_aggregate_kernel(%arg0: i32, %arg1: memref<8x256xf32, #tpu.memory_space<vmem>>, %arg2: memref<256x256xbf16, #tpu.memory_space<vmem>>, %arg3: memref<1x256xf32, #tpu.memory_space<vmem>>, %arg4: memref<256x128xbf16, #tpu.memory_space<vmem>>, %arg5: memref<1x128xf32, #tpu.memory_space<vmem>>, %arg6: memref<8x128xf32, #tpu.memory_space<vmem>>) attributes {dimension_semantics = [#tpu.dimension_semantics<parallel>], iteration_bounds = array<i64: 1>, scalar_prefetch = 0 : i64, scratch_operands = 0 : i64, tpu.core_type = #tpu.core_type<tc>, window_params = [{transform_indices = @transform_0, window_bounds = array<i64: 8, 256>}, {pipeline_mode = #tpu.pipeline_mode<synchronous>, transform_indices = @transform_1, window_bounds = array<i64: 256, 256>}, {pipeline_mode = #tpu.pipeline_mode<synchronous>, transform_indices = @transform_2, window_bounds = array<i64: 1, 256>}, {pipeline_mode = #tpu.pipeline_mode<synchronous>, transform_indices = @transform_3, window_bounds = array<i64: 256, 128>}, {pipeline_mode = #tpu.pipeline_mode<synchronous>, transform_indices = @transform_4, window_bounds = array<i64: 1, 128>}, {transform_indices = @transform_5, window_bounds = array<i64: 8, 128>}]} {
    %c0 = arith.constant 0 : index
    %c0_0 = arith.constant 0 : index
    %0 = vector.load %arg1[%c0, %c0_0] : memref<8x256xf32, #tpu.memory_space<vmem>>, vector<8x256xf32>
    %1 = arith.truncf %0 : vector<8x256xf32> to vector<8x256xbf16>
    %c0_1 = arith.constant 0 : index
    %c0_2 = arith.constant 0 : index
    %2 = vector.load %arg2[%c0_1, %c0_2] : memref<256x256xbf16, #tpu.memory_space<vmem>>, vector<256x256xbf16>
    %cst = arith.constant dense<0.000000e+00> : vector<8x256xf32>
    %3 = tpu.matmul %1, %2, %cst {dimension_numbers = #tpu.dot_dimension_numbers<[1], [0], [0], [1], [0, 0, 1, 1], [], []>} : vector<8x256xbf16>, vector<256x256xbf16>, vector<8x256xf32> -> vector<8x256xf32>
    %c0_3 = arith.constant 0 : index
    %c0_4 = arith.constant 0 : index
    %4 = vector.load %arg3[%c0_3, %c0_4] : memref<1x256xf32, #tpu.memory_space<vmem>>, vector<1x256xf32>
    %5 = vector.broadcast %4 : vector<1x256xf32> to vector<8x256xf32>
    %6 = arith.addf %3, %5 : vector<8x256xf32>
    %cst_5 = arith.constant 0.000000e+00 : f32
    %7 = vector.broadcast %cst_5 : f32 to vector<8x256xf32>
    %8 = arith.maximumf %6, %7 : vector<8x256xf32>
    %9 = arith.truncf %8 : vector<8x256xf32> to vector<8x256xbf16>
    %c0_6 = arith.constant 0 : index
    %c0_7 = arith.constant 0 : index
    %10 = vector.load %arg4[%c0_6, %c0_7] : memref<256x128xbf16, #tpu.memory_space<vmem>>, vector<256x128xbf16>
    %cst_8 = arith.constant dense<0.000000e+00> : vector<8x128xf32>
    %11 = tpu.matmul %9, %10, %cst_8 {dimension_numbers = #tpu.dot_dimension_numbers<[1], [0], [0], [1], [0, 0, 1, 1], [], []>} : vector<8x256xbf16>, vector<256x128xbf16>, vector<8x128xf32> -> vector<8x128xf32>
    %c0_9 = arith.constant 0 : index
    %c0_10 = arith.constant 0 : index
    %12 = vector.load %arg5[%c0_9, %c0_10] : memref<1x128xf32, #tpu.memory_space<vmem>>, vector<1x128xf32>
    %13 = vector.broadcast %12 : vector<1x128xf32> to vector<8x128xf32>
    %14 = arith.addf %11, %13 : vector<8x128xf32>
    %cst_11 = arith.constant 0.000000e+00 : f32
    %15 = vector.broadcast %cst_11 : f32 to vector<8x128xf32>
    %16 = arith.subf %15, %14 : vector<8x128xf32>
    %17 = math.exp %16 : vector<8x128xf32>
    %cst_12 = arith.constant 1.000000e+00 : f32
    %18 = vector.broadcast %cst_12 : f32 to vector<8x128xf32>
    %19 = arith.addf %18, %17 : vector<8x128xf32>
    %cst_13 = arith.constant 1.000000e+00 : f32
    %20 = vector.broadcast %cst_13 : f32 to vector<8x128xf32>
    %21 = arith.divf %20, %19 : vector<8x128xf32>
    %c0_14 = arith.constant 0 : index
    %c0_15 = arith.constant 0 : index
    %22 = vector.load %arg6[%c0_14, %c0_15] : memref<8x128xf32, #tpu.memory_space<vmem>>, vector<8x128xf32>
    tpu.vector_store %arg6[%c0_14, %c0_15], %21 {strides = array<i32>} : memref<8x128xf32, #tpu.memory_space<vmem>>, vector<8x128xf32>,
    return
  }
  func.func @transform_0(%arg0: i32) -> (i32, i32) {
    %c0_i32 = arith.constant 0 : i32
    %c0_i32_0 = arith.constant 0 : i32
    return %arg0, %c0_i32 : i32, i32
  }
  func.func @transform_1(%arg0: i32) -> (i32, i32) {
    %c0_i32 = arith.constant 0 : i32
    %c0_i32_0 = arith.constant 0 : i32
    %c0_i32_1 = arith.constant 0 : i32
    return %c0_i32, %c0_i32_0 : i32, i32
  }
  func.func @transform_2(%arg0: i32) -> (i32, i32) {
    %c0_i32 = arith.constant 0 : i32
    %c0_i32_0 = arith.constant 0 : i32
    %c0_i32_1 = arith.constant 0 : i32
    return %c0_i32, %c0_i32_0 : i32, i32
  }
  func.func @transform_3(%arg0: i32) -> (i32, i32) {
    %c0_i32 = arith.constant 0 : i32
    %c0_i32_0 = arith.constant 0 : i32
    %c0_i32_1 = arith.constant 0 : i32
    return %c0_i32, %c0_i32_0 : i32, i32
  }
  func.func @transform_4(%arg0: i32) -> (i32, i32) {
    %c0_i32 = arith.constant 0 : i32
    %c0_i32_0 = arith.constant 0 : i32
    %c0_i32_1 = arith.constant 0 : i32
    return %c0_i32, %c0_i32_0 : i32, i32
  }
  func.func @transform_5(%arg0: i32) -> (i32, i32) {
    %c0_i32 = arith.constant 0 : i32
    %c0_i32_0 = arith.constant 0 : i32
    return %arg0, %c0_i32 : i32, i32
  }
}

</mosaic_0001>

<llo_original>
// kernel: tile.13
$region0: #{tile.13}
  #allocation0 [shape = 's32[1]{0}', space=sflag, size = 0x4, scoped, tag = 'scoped memory for tile.13']
  %s0 = inlined_call_operand.vmem [shape: f32[32], index: 0, kind: input, shape index: {}]
  %s1 = inlined_call_operand.vmem [shape: f32[8,32], index: 1, kind: output, shape index: {}]
  // Predicated region
  $region2: #{tile.13} parent=0 // pred_check
    _
  $region3: #{tile.13} parent=0 // pred_check_branch
    %3 = sbr.rel (0) target = $region5
  $region4: #{tile.13} parent=0 // pred_region
    _
  $region5: #{tile.13} parent=0 // pred_fallthru
    _
  %v4 = vld [vmem:[%s0] ss:$0 sm:$0xff]
  %5 = vst [vmem:[%s1] sm:$0xff] %v4

// kernel: tile.14
$region0: #{tile.14}
  %s0 = inlined_call_operand.vmem [shape: f32[8,32], index: 0, kind: input, shape index: {}]
  %s1 = inlined_call_operand.vmem [shape: f32[1,256], index: 1, kind: output, shape index: {}]
  $region1: #{tile.14} parent=0
    #allocation0 [shape = 'u8[8192]{0}', space=vmem, size = 0x2000, scoped, tag = 'scoped mem for output reshape']
    %s2 = smov 3
    %v3 = vld [vmem:[%s0] ss:$4 sm:%s2]
    %vm4 = vcmask 261120
    %5 = vst.msk [vmem:[#allocation0] ss:$8 sm:$0x3] %vm4, %v3
    %s6 = scalar_lea.vmem %s0, 3
    %s7 = smov 3
    %v8 = vld [vmem:[%s6] ss:$4 sm:%s7]
    %9 = vrot.lane.b32.xlu0 %v8, 96
    %v10 = vpop.permute.xlu0 %9
    %vm11 = vcmask 1048320
    %12 = vst.msk [vmem:[#allocation0] ss:$8 sm:$0x3] %vm11, %v10
    %s13 = scalar_lea.vmem %s0, 2
    %s14 = smov 3
    %v15 = vld [vmem:[%s13] ss:$4 sm:%s14]
    %16 = vrot.lane.b32.xlu0 %v15, 64
    %v17 = vpop.permute.xlu0 %16
    %vm18 = vcmask 785920
    %19 = vst.msk [vmem:[#allocation0] ss:$8 sm:$0x3] %vm18, %v17
    %s20 = scalar_lea.vmem %s0, 1
    %s21 = smov 3
    %v22 = vld [vmem:[%s20] ss:$4 sm:%s21]
    %23 = vrot.lane.b32.xlu0 %v22, 32
    %v24 = vpop.permute.xlu0 %23
    %vm25 = vcmask 523520
    %26 = vst.msk [vmem:[#allocation0] ss:$8 sm:$0x3] %vm25, %v24
    %s28 = sshllo.u32 0, 1
    %v30 = vld [vmem:[#allocation0] sm:%s28]
    %s31 = sshllo.u32 0, 1
    %32 = vst [vmem:[%s1] sm:%s31] %v30
    %s33 = scalar_lea.vmem [#allocation0], 8
    %v34 = vld [vmem:[%s33] sm:%s28]
    %s35 = sshllo.u32 0, 1
    %s36 = scalar_lea.vmem %s1, 1
    %37 = vst [vmem:[%s36] sm:%s35] %v34

// kernel: tile.18
$region0: #{tile.18}
  #allocation0 [shape = 's32[1]{0}', space=sflag, size = 0x4, scoped, tag = 'scoped memory for tile.18']
  %s0 = inlined_call_operand.vmem [shape: f32[16], index: 0, kind: input, shape index: {}]
  %s1 = inlined_call_operand.vmem [shape: f32[8,16], index: 1, kind: output, shape index: {}]
  // Predicated region
  $region2: #{tile.18} parent=0 // pred_check
    _
  $region3: #{tile.18} parent=0 // pred_check_branch
    %3 = sbr.rel (0) target = $region5
  $region4: #{tile.18} parent=0 // pred_region
    _
  $region5: #{tile.18} parent=0 // pred_fallthru
    _
  %v4 = vld [vmem:[%s0] ss:$0 sm:$0xff]
  %5 = vst [vmem:[%s1] sm:$0xff] %v4

// kernel: tile.19
$region0: #{tile.19}
  %s0 = inlined_call_operand.vmem [shape: f32[8,16], index: 0, kind: input, shape index: {}]
  %s1 = inlined_call_operand.vmem [shape: f32[1,128], index: 1, kind: output, shape index: {}]
  $region1: #{tile.19} parent=0
    #allocation0 [shape = 'u8[4096]{0}', space=vmem, size = 0x1000, scoped, tag = 'scoped mem for output reshape']
    %v2 = vld [vmem:[%s0] sm:$0x1]
    %vm3 = vcmask 130048
    %4 = vst.msk [vmem:[#allocation0] sm:$0x1] %vm3, %v2
    %s5 = scalar_lea.vmem %s0, 7
    %v6 = vld [vmem:[%s5] sm:$0x1]
    %7 = vrot.lane.b32.xlu0 %v6, 112
    %v8 = vpop.permute.xlu0 %7
    %vm9 = vcmask 1048448
    %10 = vst.msk [vmem:[#allocation0] sm:$0x1] %vm9, %v8
    %s11 = scalar_lea.vmem %s0, 6
    %v12 = vld [vmem:[%s11] sm:$0x1]
    %13 = vrot.lane.b32.xlu0 %v12, 96
    %v14 = vpop.permute.xlu0 %13
    %vm15 = vcmask 917248
    %16 = vst.msk [vmem:[#allocation0] sm:$0x1] %vm15, %v14
    %s17 = scalar_lea.vmem %s0, 5
    %v18 = vld [vmem:[%s17] sm:$0x1]
    %19 = vrot.lane.b32.xlu0 %v18, 80
    %v20 = vpop.permute.xlu0 %19
    %vm21 = vcmask 786048
    %22 = vst.msk [vmem:[#allocation0] sm:$0x1] %vm21, %v20
    %s23 = scalar_lea.vmem %s0, 4
    %v24 = vld [vmem:[%s23] sm:$0x1]
    %25 = vrot.lane.b32.xlu0 %v24, 64
    %v26 = vpop.permute.xlu0 %25
    %vm27 = vcmask 654848
    %28 = vst.msk [vmem:[#allocation0] sm:$0x1] %vm27, %v26
    %s29 = scalar_lea.vmem %s0, 3
    %v30 = vld [vmem:[%s29] sm:$0x1]
    %31 = vrot.lane.b32.xlu0 %v30, 48
    %v32 = vpop.permute.xlu0 %31
    %vm33 = vcmask 523648
    %34 = vst.msk [vmem:[#allocation0] sm:$0x1] %vm33, %v32
    %s35 = scalar_lea.vmem %s0, 2
    %v36 = vld [vmem:[%s35] sm:$0x1]
    %37 = vrot.lane.b32.xlu0 %v36, 32
    %v38 = vpop.permute.xlu0 %37
    %vm39 = vcmask 392448
    %40 = vst.msk [vmem:[#allocation0] sm:$0x1] %vm39, %v38
    %s41 = scalar_lea.vmem %s0, 1
    %v42 = vld [vmem:[%s41] sm:$0x1]
    %43 = vrot.lane.b32.xlu0 %v42, 16
    %v44 = vpop.permute.xlu0 %43
    %vm45 = vcmask 261248
    %46 = vst.msk [vmem:[#allocation0] sm:$0x1] %vm45, %v44
    %s48 = sshllo.u32 0, 1
    %v50 = vld [vmem:[#allocation0] sm:%s48]
    %s51 = sshllo.u32 0, 1
    %52 = vst [vmem:[%s1] sm:%s51] %v50

// kernel: aggregate_forward.1
$region0: #{aggregate_forward.1}
  #allocation0 [shape = 'u32[]', space=smem, size = 0x4, offset = 0x4, fixed_abs, tag = 'smem constant byte address 0x4 - core index']
  #allocation1 [shape = 'u32[144,128]{1,0:T(1,128)}', space=vmem, size = 0x12000, scoped, tag = 'internal scratch']
  %s0 = inlined_call_operand.vmem [shape: f32[2,256], index: 0, kind: input, shape index: {}]
  %s1 = inlined_call_operand.vmem [shape: bf16[256,256], index: 1, kind: input, shape index: {}]
  %s2 = inlined_call_operand.vmem [shape: f32[1,256], index: 2, kind: input, shape index: {}]
  %s3 = inlined_call_operand.vmem [shape: bf16[256,128], index: 3, kind: input, shape index: {}]
  %s4 = inlined_call_operand.vmem [shape: f32[1,128], index: 4, kind: input, shape index: {}]
  %s5 = inlined_call_operand.vmem [shape: f32[2,128], index: 5, kind: output, shape index: {}]
  %s6 = sld [smem:[#allocation0]]
  $region60: #{aggregate_forward.1} parent=0
    _
  %s8 = ssub.s32 1, %s6
  %s9 = scalar_select 0, %s8, %s6
  $region1: #{aggregate_forward.1} parent=0
    #allocation2 [shape = 'u8[4096]{0}', space=vmem, size = 0x1000, scoped, tag = 'output window, operand 0, single buffered']
    // Predicated region
    $region2: #{aggregate_forward.1} parent=1 // pred_check
      _
    $region3: #{aggregate_forward.1} parent=1 // pred_check_branch
      %11 = sbr.rel (0) target = $region5
    $region4: #{aggregate_forward.1} parent=1 // pred_region
      _
    $region5: #{aggregate_forward.1} parent=1 // pred_fallthru
      _
    // Predicated region
    $region6: #{aggregate_forward.1} parent=1 // pred_check
      _
    $region7: #{aggregate_forward.1} parent=1 // pred_check_branch
      %13 = sbr.rel (0) target = $region9
    $region8: #{aggregate_forward.1} parent=1 // pred_region
      _
    $region9: #{aggregate_forward.1} parent=1 // pred_fallthru
      _
    // Predicated region
    $region10: #{aggregate_forward.1} parent=1 // pred_check
      _
    $region11: #{aggregate_forward.1} parent=1 // pred_check_branch
      %15 = sbr.rel (0) target = $region13
    $region12: #{aggregate_forward.1} parent=1 // pred_region
      _
    $region13: #{aggregate_forward.1} parent=1 // pred_fallthru
      _
    // Predicated region
    $region14: #{aggregate_forward.1} parent=1 // pred_check
      _
    $region15: #{aggregate_forward.1} parent=1 // pred_check_branch
      %17 = sbr.rel (0) target = $region17
    $region16: #{aggregate_forward.1} parent=1 // pred_region
      _
    $region17: #{aggregate_forward.1} parent=1 // pred_fallthru
      _
    // Predicated region
    $region18: #{aggregate_forward.1} parent=1 // pred_check
      _
    $region19: #{aggregate_forward.1} parent=1 // pred_check_branch
      %19 = sbr.rel (0) target = $region21
    $region20: #{aggregate_forward.1} parent=1 // pred_region
      _
    $region21: #{aggregate_forward.1} parent=1 // pred_fallthru
      _
    %v21 = vld [vmem:[%s0] sm:$0xf]
    %v22 = vld [vmem:[%s0 + $0x4] sm:$0xf]
    %v23 = vld [vmem:[%s0 + $0x8] sm:$0xf]
    %v24 = vld [vmem:[%s0 + $0xc] sm:$0xf]
    %v29 = vcombine.low %v21, %v22
    %v30 = vcombine.low %v23, %v24
    %v32 = vunpack.c.l.s4 1983009808
    %v33 = vunpack.c.0.s8 %v32
    %v34 = vlaneseq
    %v35 = vshrl.u32 %v34, 7
    %v36 = vsub.s32 %v33, %v35
    %v37 = vrot.slane %v29, %v36
    %v39 = vunpack.c.l.s4 1983009808
    %v40 = vunpack.c.0.s8 %v39
    %v41 = vlaneseq
    %v42 = vshrl.u32 %v41, 7
    %v43 = vsub.s32 %v40, %v42
    %v44 = vrot.slane %v30, %v43
    %v45 = vcombine.low %v37, %v44
    %v46 = vcombine.high %v37, %v44
    %v49 = vpack.c.bf16 %v45, %v45
    %v50 = vpack.c.bf16 %v46, %v46
    %v51 = vld [vmem:[%s1] sm:$0xff]
    %v52 = vld [vmem:[%s1 + $0x8] sm:$0xff]
    %v53 = vld [vmem:[%s1 + $0x10] sm:$0xff]
    %v54 = vld [vmem:[%s1 + $0x18] sm:$0xff]
    %v55 = vld [vmem:[%s1 + $0x20] sm:$0xff]
    %v56 = vld [vmem:[%s1 + $0x28] sm:$0xff]
    %v57 = vld [vmem:[%s1 + $0x30] sm:$0xff]
    %v58 = vld [vmem:[%s1 + $0x38] sm:$0xff]
    %v59 = vld [vmem:[%s1 + $0x40] sm:$0xff]
    %v60 = vld [vmem:[%s1 + $0x48] sm:$0xff]
    %v61 = vld [vmem:[%s1 + $0x50] sm:$0xff]
    %v62 = vld [vmem:[%s1 + $0x58] sm:$0xff]
    %v63 = vld [vmem:[%s1 + $0x60] sm:$0xff]
    %v64 = vld [vmem:[%s1 + $0x68] sm:$0xff]
    %v65 = vld [vmem:[%s1 + $0x70] sm:$0xff]
    %v66 = vld [vmem:[%s1 + $0x78] sm:$0xff]
    %v67 = vld [vmem:[%s1 + $0x80] sm:$0xff]
    %v68 = vld [vmem:[%s1 + $0x88] sm:$0xff]
    %v69 = vld [vmem:[%s1 + $0x90] sm:$0xff]
    %v70 = vld [vmem:[%s1 + $0x98] sm:$0xff]
    %v71 = vld [vmem:[%s1 + $0xa0] sm:$0xff]
    %v72 = vld [vmem:[%s1 + $0xa8] sm:$0xff]
    %v73 = vld [vmem:[%s1 + $0xb0] sm:$0xff]
    %v74 = vld [vmem:[%s1 + $0xb8] sm:$0xff]
    %v75 = vld [vmem:[%s1 + $0xc0] sm:$0xff]
    %v76 = vld [vmem:[%s1 + $0xc8] sm:$0xff]
    %v77 = vld [vmem:[%s1 + $0xd0] sm:$0xff]
    %v78 = vld [vmem:[%s1 + $0xd8] sm:$0xff]
    %v79 = vld [vmem:[%s1 + $0xe0] sm:$0xff]
    %v80 = vld [vmem:[%s1 + $0xe8] sm:$0xff]
    %v81 = vld [vmem:[%s1 + $0xf0] sm:$0xff]
    %v82 = vld [vmem:[%s1 + $0xf8] sm:$0xff]
    %v83 = vld [vmem:[%s2] sm:$0x3]
    %v85 = vlaneseq
    %v86 = vshrl.u32 %v85, 7
    %v87 = vsub.s32 0, %v86
    %v88 = vrot.slane %v83, %v87
    %v89 = vlaneseq
    %v90 = vshrl.u32 %v89, 7
    %v91 = vsub.s32 1, %v90
    %v92 = vrot.slane %v83, %v91
    %v127 = vunpack.c.l.b16 %v51
    %v128 = vunpack.c.h.b16 %v51
    %v129 = vunpack.c.l.b16 %v52
    %v130 = vunpack.c.h.b16 %v52
    %v131 = vunpack.c.l.b16 %v53
    %v132 = vunpack.c.h.b16 %v53
    %v133 = vunpack.c.l.b16 %v54
    %v134 = vunpack.c.h.b16 %v54
    %v135 = vunpack.c.l.b16 %v55
    %v136 = vunpack.c.h.b16 %v55
    %v137 = vunpack.c.l.b16 %v56
    %v138 = vunpack.c.h.b16 %v56
    %v139 = vunpack.c.l.b16 %v57
    %v140 = vunpack.c.h.b16 %v57
    %v141 = vunpack.c.l.b16 %v58
    %v142 = vunpack.c.h.b16 %v58
    %v143 = vunpack.c.l.b16 %v59
    %v144 = vunpack.c.h.b16 %v59
    %v145 = vunpack.c.l.b16 %v60
    %v146 = vunpack.c.h.b16 %v60
    %v147 = vunpack.c.l.b16 %v61
    %v148 = vunpack.c.h.b16 %v61
    %v149 = vunpack.c.l.b16 %v62
    %v150 = vunpack.c.h.b16 %v62
    %v151 = vunpack.c.l.b16 %v63
    %v152 = vunpack.c.h.b16 %v63
    %v153 = vunpack.c.l.b16 %v64
    %v154 = vunpack.c.h.b16 %v64
    %v155 = vunpack.c.l.b16 %v65
    %v156 = vunpack.c.h.b16 %v65
    %v157 = vunpack.c.l.b16 %v66
    %v158 = vunpack.c.h.b16 %v66
    %v159 = vunpack.c.l.b16 %v67
    %v160 = vunpack.c.h.b16 %v67
    %v161 = vunpack.c.l.b16 %v68
    %v162 = vunpack.c.h.b16 %v68
    %v163 = vunpack.c.l.b16 %v69
    %v164 = vunpack.c.h.b16 %v69
    %v165 = vunpack.c.l.b16 %v70
    %v166 = vunpack.c.h.b16 %v70
    %v167 = vunpack.c.l.b16 %v71
    %v168 = vunpack.c.h.b16 %v71
    %v169 = vunpack.c.l.b16 %v72
    %v170 = vunpack.c.h.b16 %v72
    %v171 = vunpack.c.l.b16 %v73
    %v172 = vunpack.c.h.b16 %v73
    %v173 = vunpack.c.l.b16 %v74
    %v174 = vunpack.c.h.b16 %v74
    %v175 = vunpack.c.l.b16 %v75
    %v176 = vunpack.c.h.b16 %v75
    %v177 = vunpack.c.l.b16 %v76
    %v178 = vunpack.c.h.b16 %v76
    %v179 = vunpack.c.l.b16 %v77
    %v180 = vunpack.c.h.b16 %v77
    %v181 = vunpack.c.l.b16 %v78
    %v182 = vunpack.c.h.b16 %v78
    %v183 = vunpack.c.l.b16 %v79
    %v184 = vunpack.c.h.b16 %v79
    %v185 = vunpack.c.l.b16 %v80
    %v186 = vunpack.c.h.b16 %v80
    %v187 = vunpack.c.l.b16 %v81
    %v188 = vunpack.c.h.b16 %v81
    %v189 = vunpack.c.l.b16 %v82
    %v190 = vunpack.c.h.b16 %v82
    %v191 = vpack.c.b16 %v129, %v127
    %v192 = vpack.c.b16 %v130, %v128
    %v193 = vpack.c.b16 %v133, %v131
    %v194 = vpack.c.b16 %v134, %v132
    %v195 = vpack.c.b16 %v137, %v135
    %v196 = vpack.c.b16 %v138, %v136
    %v197 = vpack.c.b16 %v141, %v139
    %v198 = vpack.c.b16 %v142, %v140
    %v199 = vpack.c.b16 %v145, %v143
    %v200 = vpack.c.b16 %v146, %v144
    %v201 = vpack.c.b16 %v149, %v147
    %v202 = vpack.c.b16 %v150, %v148
    %v203 = vpack.c.b16 %v153, %v151
    %v204 = vpack.c.b16 %v154, %v152
    %v205 = vpack.c.b16 %v157, %v155
    %v206 = vpack.c.b16 %v158, %v156
    %v207 = vpack.c.b16 %v161, %v159
    %v208 = vpack.c.b16 %v162, %v160
    %v209 = vpack.c.b16 %v165, %v163
    %v210 = vpack.c.b16 %v166, %v164
    %v211 = vpack.c.b16 %v169, %v167
    %v212 = vpack.c.b16 %v170, %v168
    %v213 = vpack.c.b16 %v173, %v171
    %v214 = vpack.c.b16 %v174, %v172
    %v215 = vpack.c.b16 %v177, %v175
    %v216 = vpack.c.b16 %v178, %v176
    %v217 = vpack.c.b16 %v181, %v179
    %v218 = vpack.c.b16 %v182, %v180
    %v219 = vpack.c.b16 %v185, %v183
    %v220 = vpack.c.b16 %v186, %v184
    %v221 = vpack.c.b16 %v189, %v187
    %v222 = vpack.c.b16 %v190, %v188
    %255 = vmatprep.subr.bf16.mxu0 %v192
    %256 = vmatpush1.bf16.msra.mxu0 %v191
    %257 = vmatprep.subr.bf16.mxu0 %v194
    %258 = vmatpush1.bf16.msra.mxu0 %v193
    %259 = vmatprep.subr.bf16.mxu0 %v196
    %260 = vmatpush1.bf16.msra.mxu0 %v195
    %261 = vmatprep.subr.bf16.mxu0 %v198
    %262 = vmatpush1.bf16.msra.mxu0 %v197
    %263 = vmatprep.subr.bf16.mxu0 %v200
    %264 = vmatpush1.bf16.msra.mxu0 %v199
    %265 = vmatprep.subr.bf16.mxu0 %v202
    %266 = vmatpush1.bf16.msra.mxu0 %v201
    %267 = vmatprep.subr.bf16.mxu0 %v204
    %268 = vmatpush1.bf16.msra.mxu0 %v203
    %269 = vmatprep.subr.bf16.mxu0 %v206
    %270 = vmatpush1.bf16.msra.mxu0 %v205
    %271 = vmatprep.subr.bf16.mxu0 %v208
    %272 = vmatpush1.bf16.msra.mxu0 %v207
    %273 = vmatprep.subr.bf16.mxu0 %v210
    %274 = vmatpush1.bf16.msra.mxu0 %v209
    %275 = vmatprep.subr.bf16.mxu0 %v212
    %276 = vmatpush1.bf16.msra.mxu0 %v211
    %277 = vmatprep.subr.bf16.mxu0 %v214
    %278 = vmatpush1.bf16.msra.mxu0 %v213
    %279 = vmatprep.subr.bf16.mxu0 %v216
    %280 = vmatpush1.bf16.msra.mxu0 %v215
    %281 = vmatprep.subr.bf16.mxu0 %v218
    %282 = vmatpush1.bf16.msra.mxu0 %v217
    %283 = vmatprep.subr.bf16.mxu0 %v220
    %284 = vmatpush1.bf16.msra.mxu0 %v219
    %285 = vmatprep.subr.bf16.mxu0 %v222
    %286 = vmatpush1.bf16.msra.mxu0 %v221
    %287 = vmatprep.mubr.bf16.mxu0 %v50
    %288 = vmatmul.mubr.bf16.gmra.mrb[0].mxu0 %v49
    %v289 = vpop.f32.mrb[0].mxu0
    %v290 = vadd.f32 %v88, %v289
    %v291 = vpop.f32.mrb[0].mxu0
    %v292 = vadd.f32 %v92, %v291
    %v293 = vpop.f32.mrb[0].mxu0
    %v294 = vpop.f32.mrb[0].mxu0
    %295 = vdwg.mxu0
    %v296 = vmax.f32 %v290, 0.0
    %v297 = vmax.f32 %v292, 0.0
    %v298 = vpack.c.bf16 %v296, %v296
    %v299 = vpack.c.bf16 %v297, %v297
    %v300 = vld [vmem:[%s3] sm:$0xf]
    %v301 = vld [vmem:[%s3 + $0x4] sm:$0xf]
    %v302 = vld [vmem:[%s3 + $0x8] sm:$0xf]
    %v303 = vld [vmem:[%s3 + $0xc] sm:$0xf]
    %v304 = vld [vmem:[%s3 + $0x10] sm:$0xf]
    %v305 = vld [vmem:[%s3 + $0x14] sm:$0xf]
    %v306 = vld [vmem:[%s3 + $0x18] sm:$0xf]
    %v307 = vld [vmem:[%s3 + $0x1c] sm:$0xf]
    %v308 = vld [vmem:[%s3 + $0x20] sm:$0xf]
    %v309 = vld [vmem:[%s3 + $0x24] sm:$0xf]
    %v310 = vld [vmem:[%s3 + $0x28] sm:$0xf]
    %v311 = vld [vmem:[%s3 + $0x2c] sm:$0xf]
    %v312 = vld [vmem:[%s3 + $0x30] sm:$0xf]
    %v313 = vld [vmem:[%s3 + $0x34] sm:$0xf]
    %v314 = vld [vmem:[%s3 + $0x38] sm:$0xf]
    %v315 = vld [vmem:[%s3 + $0x3c] sm:$0xf]
    %v316 = vld [vmem:[%s3 + $0x40] sm:$0xf]
    %v317 = vld [vmem:[%s3 + $0x44] sm:$0xf]
    %v318 = vld [vmem:[%s3 + $0x48] sm:$0xf]
    %v319 = vld [vmem:[%s3 + $0x4c] sm:$0xf]
    %v320 = vld [vmem:[%s3 + $0x50] sm:$0xf]
    %v321 = vld [vmem:[%s3 + $0x54] sm:$0xf]
    %v322 = vld [vmem:[%s3 + $0x58] sm:$0xf]
    %v323 = vld [vmem:[%s3 + $0x5c] sm:$0xf]
    %v324 = vld [vmem:[%s3 + $0x60] sm:$0xf]
    %v325 = vld [vmem:[%s3 + $0x64] sm:$0xf]
    %v326 = vld [vmem:[%s3 + $0x68] sm:$0xf]
    %v327 = vld [vmem:[%s3 + $0x6c] sm:$0xf]
    %v328 = vld [vmem:[%s3 + $0x70] sm:$0xf]
    %v329 = vld [vmem:[%s3 + $0x74] sm:$0xf]
    %v330 = vld [vmem:[%s3 + $0x78] sm:$0xf]
    %v331 = vld [vmem:[%s3 + $0x7c] sm:$0xf]
    %v332 = vld [vmem:[%s4] sm:$0x1]
    %v334 = vlaneseq
    %v335 = vshrl.u32 %v334, 7
    %v336 = vsub.s32 0, %v335
    %v337 = vrot.slane %v332, %v336
    %v371 = vunpack.c.l.b16 %v300
    %v372 = vunpack.c.l.b16 %v301
    %v373 = vunpack.c.l.b16 %v302
    %v374 = vunpack.c.l.b16 %v303
    %v375 = vunpack.c.l.b16 %v304
    %v376 = vunpack.c.l.b16 %v305
    %v377 = vunpack.c.l.b16 %v306
    %v378 = vunpack.c.l.b16 %v307
    %v379 = vunpack.c.l.b16 %v308
    %v380 = vunpack.c.l.b16 %v309
    %v381 = vunpack.c.l.b16 %v310
    %v382 = vunpack.c.l.b16 %v311
    %v383 = vunpack.c.l.b16 %v312
    %v384 = vunpack.c.l.b16 %v313
    %v385 = vunpack.c.l.b16 %v314
    %v386 = vunpack.c.l.b16 %v315
    %v387 = vunpack.c.l.b16 %v316
    %v388 = vunpack.c.l.b16 %v317
    %v389 = vunpack.c.l.b16 %v318
    %v390 = vunpack.c.l.b16 %v319
    %v391 = vunpack.c.l.b16 %v320
    %v392 = vunpack.c.l.b16 %v321
    %v393 = vunpack.c.l.b16 %v322
    %v394 = vunpack.c.l.b16 %v323
    %v395 = vunpack.c.l.b16 %v324
    %v396 = vunpack.c.l.b16 %v325
    %v397 = vunpack.c.l.b16 %v326
    %v398 = vunpack.c.l.b16 %v327
    %v399 = vunpack.c.l.b16 %v328
    %v400 = vunpack.c.l.b16 %v329
    %v401 = vunpack.c.l.b16 %v330
    %v402 = vunpack.c.l.b16 %v331
    %v403 = vpack.c.b16 %v372, %v371
    %v404 = vpack.c.b16 %v374, %v373
    %v405 = vpack.c.b16 %v376, %v375
    %v406 = vpack.c.b16 %v378, %v377
    %v407 = vpack.c.b16 %v380, %v379
    %v408 = vpack.c.b16 %v382, %v381
    %v409 = vpack.c.b16 %v384, %v383
    %v410 = vpack.c.b16 %v386, %v385
    %v411 = vpack.c.b16 %v388, %v387
    %v412 = vpack.c.b16 %v390, %v389
    %v413 = vpack.c.b16 %v392, %v391
    %v414 = vpack.c.b16 %v394, %v393
    %v415 = vpack.c.b16 %v396, %v395
    %v416 = vpack.c.b16 %v398, %v397
    %v417 = vpack.c.b16 %v400, %v399
    %v418 = vpack.c.b16 %v402, %v401
    %435 = vmatprep.subr.bf16.mxu0 0
    %436 = vmatpush1.bf16.msra.mxu0 %v403
    %437 = vmatprep.subr.bf16.mxu0 0
    %438 = vmatpush1.bf16.msra.mxu0 %v404
    %439 = vmatprep.subr.bf16.mxu0 0
    %440 = vmatpush1.bf16.msra.mxu0 %v405
    %441 = vmatprep.subr.bf16.mxu0 0
    %442 = vmatpush1.bf16.msra.mxu0 %v406
    %443 = vmatprep.subr.bf16.mxu0 0
    %444 = vmatpush1.bf16.msra.mxu0 %v407
    %445 = vmatprep.subr.bf16.mxu0 0
    %446 = vmatpush1.bf16.msra.mxu0 %v408
    %447 = vmatprep.subr.bf16.mxu0 0
    %448 = vmatpush1.bf16.msra.mxu0 %v409
    %449 = vmatprep.subr.bf16.mxu0 0
    %450 = vmatpush1.bf16.msra.mxu0 %v410
    %451 = vmatprep.subr.bf16.mxu0 0
    %452 = vmatpush1.bf16.msra.mxu0 %v411
    %453 = vmatprep.subr.bf16.mxu0 0
    %454 = vmatpush1.bf16.msra.mxu0 %v412
    %455 = vmatprep.subr.bf16.mxu0 0
    %456 = vmatpush1.bf16.msra.mxu0 %v413
    %457 = vmatprep.subr.bf16.mxu0 0
    %458 = vmatpush1.bf16.msra.mxu0 %v414
    %459 = vmatprep.subr.bf16.mxu0 0
    %460 = vmatpush1.bf16.msra.mxu0 %v415
    %461 = vmatprep.subr.bf16.mxu0 0
    %462 = vmatpush1.bf16.msra.mxu0 %v416
    %463 = vmatprep.subr.bf16.mxu0 0
    %464 = vmatpush1.bf16.msra.mxu0 %v417
    %465 = vmatprep.subr.bf16.mxu0 0
    %466 = vmatpush1.bf16.msra.mxu0 %v418
    %467 = vmatprep.mubr.bf16.mxu0 %v299
    %468 = vmatmul.mubr.bf16.gmra.mrb[0].mxu0 %v298
    %v469 = vpop.f32.mrb[0].mxu0
    %v470 = vadd.f32 %v337, %v469
    %v471 = vpop.f32.mrb[0].mxu0
    %v472 = vpop.f32.mrb[0].mxu0
    %v473 = vpop.f32.mrb[0].mxu0
    %474 = vdwg.mxu0
    %v475 = vsub.f32 0.0, %v470
    %v476 = vmul.f32 %v475, 1.442695
    %v477 = vpow.pop %v476
    %v478 = vadd.f32 %v477, 1.0
    %v479 = vrcp.pop %v478
    %v480 = vmul.f32 1.0, %v479
    %481 = vst [vmem:[#allocation2] sm:$0xff] %v480
    // Predicated region
    $region22: #{aggregate_forward.1} parent=1 // pred_check
      _
    $region23: #{aggregate_forward.1} parent=1 // pred_check_branch
      %483 = sbr.rel (0) target = $region25
    $region24: #{aggregate_forward.1} parent=1 // pred_region
      // Predicated region
      $region26: #{aggregate_forward.1} parent=24 // pred_check
        _
      $region27: #{aggregate_forward.1} parent=24 // pred_check_branch
        %485 = sbr.rel (0) target = $region29
      $region28: #{aggregate_forward.1} parent=24 // pred_region
        // Predicated region
        $region30: #{aggregate_forward.1} parent=28 // pred_check
          _
        $region31: #{aggregate_forward.1} parent=28 // pred_check_branch
          %487 = sbr.rel target = $region33
        $region32: #{aggregate_forward.1} parent=28 // pred_region
          // Predicated region
          $region45: #{aggregate_forward.1} parent=32 // pred_check
            _
          $region46: #{aggregate_forward.1} parent=32 // pred_check_branch
            %502 = sbr.rel (0) target = $region48
          $region47: #{aggregate_forward.1} parent=32 // pred_region
            loop: start=0, step=1, limit=1
            $region49: #{aggregate_forward.1} parent=47 // loop_pre_header
              _
            $region50: #{aggregate_forward.1} parent=47 // loop_header
              %s505 = sphi 0, %s509
              %p506 = scmp.ge.s32.totalorder %s505, 1
              %s510 = sphi [#allocation2], [#allocation2]
              %s511 = sphi %s5, %s5
            $region51: #{aggregate_forward.1} parent=47 // loop_header_branch
              %508 = sbr.rel (%p506) target = $region55
            $region52: #{aggregate_forward.1} parent=47 // loop_body
              %v512 = vld [vmem:[%s510] sm:$0x3]
              %513 = vst [vmem:[%s511] sm:$0x3] %v512
            $region53: #{aggregate_forward.1} parent=47 // loop_footer
              %s509 = sadd.s32 1, %s505
            $region54: #{aggregate_forward.1} parent=47 // loop_footer_branch
              %504 = sbr.rel target = $region50
            $region55: #{aggregate_forward.1} parent=47 // loop_exit
              _
          $region48: #{aggregate_forward.1} parent=32 // pred_fallthru
            _
        $region33: #{aggregate_forward.1} parent=28 // pred_fallthru
          _
        // Predicated region
        $region34: #{aggregate_forward.1} parent=28 // pred_check
          _
        $region35: #{aggregate_forward.1} parent=28 // pred_check_branch
          %489 = sbr.rel (0) target = $region37
        $region36: #{aggregate_forward.1} parent=28 // pred_region
          loop: start=0, step=1, limit=1
          $region38: #{aggregate_forward.1} parent=36 // loop_pre_header
            _
          $region39: #{aggregate_forward.1} parent=36 // loop_header
            %s492 = sphi 0, %s496
            %p493 = scmp.ge.s32.totalorder %s492, 1
            %s497 = sphi [#allocation2], [#allocation2]
            %s498 = sphi %s5, %s5
          $region40: #{aggregate_forward.1} parent=36 // loop_header_branch
            %495 = sbr.rel (%p493) target = $region44
          $region41: #{aggregate_forward.1} parent=36 // loop_body
            %v499 = vld [vmem:[%s497] sm:$0x3]
            %500 = vst [vmem:[%s498] sm:$0x3] %v499
          $region42: #{aggregate_forward.1} parent=36 // loop_footer
            %s496 = sadd.s32 1, %s492
          $region43: #{aggregate_forward.1} parent=36 // loop_footer_branch
            %491 = sbr.rel target = $region39
          $region44: #{aggregate_forward.1} parent=36 // loop_exit
            _
        $region37: #{aggregate_forward.1} parent=28 // pred_fallthru
          _
      $region29: #{aggregate_forward.1} parent=24 // pred_fallthru
        _
      %514 = vnop
    $region25: #{aggregate_forward.1} parent=1 // pred_fallthru
      _
    // Predicated region
    $region56: #{aggregate_forward.1} parent=1 // pred_check
      _
    $region57: #{aggregate_forward.1} parent=1 // pred_check_branch
      %516 = sbr.rel (0) target = $region59
    $region58: #{aggregate_forward.1} parent=1 // pred_region
      _
    $region59: #{aggregate_forward.1} parent=1 // pred_fallthru
      _

</llo_original>
